<compile_context>
chip_gen: v7x
topology: tpu7x:2x2x1
jax: 0.10.0
libtpu: 0.0.40
codegen_flags: <defaults>
</compile_context>

<pallas_src>
import functools

import jax
import jax.numpy as jnp
from jax.experimental import pallas as pl
from jax.experimental.pallas import tpu as pltpu

_LANES = 128
_SUBLANES = 8
_NEG_FILL = -100.0  # pad value for logits: stable-BCE contribution is ~0


def _multi_bce_kernel(x_ref, y_ref, out_ref, *, rows1, w1, w2):
    # Cast narrow dtypes to f32 on the loaded vregs (VPU/EUP math in f32).
    x = x_ref[...].astype(jnp.float32)
    y = y_ref[...].astype(jnp.float32)
    # Numerically stable BCE-with-logits per element:
    #   max(x, 0) - x*y + log1p(exp(-|x|))
    bce = jnp.maximum(x, 0.0) - x * y + jnp.log1p(jnp.exp(-jnp.abs(x)))
    # Per-row weight: first `rows1` rows belong to loss 1 (weight 1/n1),
    # the rest to loss 2 (weight sweight/n2).  Single weighted reduce.
    row = jax.lax.broadcasted_iota(jnp.int32, x.shape, 0)
    w = jnp.where(row < rows1, w1, w2)
    out_ref[0, 0] = jnp.sum(w * bce)


def _pack(x, pad_value):
    """Flatten to a dense (rows, 128) slab, rows a multiple of 8."""
    n = x.size
    rows = max(pl.cdiv(n, _LANES), 1)
    rows = pl.cdiv(rows, _SUBLANES) * _SUBLANES
    npad = rows * _LANES - n
    flat = x.reshape(-1)
    if npad:
        flat = jnp.pad(flat, (0, npad), constant_values=pad_value)
    return flat.reshape(rows, _LANES), rows


def multi_bce(logits, slogits, y1, y2, sweight=0.2):
    """MultiBCE.forward: BCE(logits, y1) + sweight * BCE(slogits, y2)."""
    assert logits.shape == y1.shape and slogits.shape == y2.shape
    n1 = logits.size
    n2 = slogits.size

    # Pack each operand densely; keep native dtype (no wrapper upcast).
    x1, r1 = _pack(logits, _NEG_FILL)
    x2, _ = _pack(slogits, _NEG_FILL)
    t1, _ = _pack(y1, 0.0)
    t2, _ = _pack(y2, 0.0)

    # Fuse both losses into one operand pair -> 2 DMAs, 1 cross-lane reduce.
    x_all = jnp.concatenate([x1, x2], axis=0)
    y_all = jnp.concatenate([t1, t2], axis=0)

    kernel = functools.partial(
        _multi_bce_kernel,
        rows1=r1,
        w1=1.0 / n1,                      # mean normalizer, loss 1
        w2=float(sweight) / n2,           # sweight folded into normalizer
    )

    cost = pl.CostEstimate(
        flops=10 * (n1 + n2),
        transcendentals=2 * (n1 + n2),
        bytes_accessed=int(x_all.size * x_all.dtype.itemsize
                           + y_all.size * y_all.dtype.itemsize + 4),
    )

    out = pl.pallas_call(
        kernel,
        out_shape=jax.ShapeDtypeStruct((1, 1), jnp.float32),
        in_specs=[pl.BlockSpec(memory_space=pltpu.MemorySpace.VMEM)] * 2,
        out_specs=pl.BlockSpec(memory_space=pltpu.MemorySpace.SMEM),
        cost_estimate=cost,
    )(x_all, y_all)
    return out[0, 0]


def _reference(logits, slogits, y1, y2, sweight=0.2):
    """Pure-JAX reference of MultiBCE (for verification)."""
    def bce_mean(x, y):
        x = x.astype(jnp.float32)
        y = y.astype(jnp.float32)
        return jnp.mean(jnp.maximum(x, 0.0) - x * y
                        + jnp.log1p(jnp.exp(-jnp.abs(x))))
    return bce_mean(logits, y1) + sweight * bce_mean(slogits, y2)


if __name__ == "__main__":
    key = jax.random.PRNGKey(0)
    k1, k2, k3, k4 = jax.random.split(key, 4)

    B, K, T = 2, 16, 8
    logits = jax.random.normal(k1, (B, K), jnp.float32)        # clip-wise logits
    slogits = jax.random.normal(k2, (B, T, K), jnp.float32)    # segment-wise logits
    y1 = jax.random.uniform(k3, (B, K), dtype=jnp.float32)     # soft targets in [0, 1]
    y2 = jax.random.uniform(k4, (B, T, K), dtype=jnp.float32)

    out = jax.block_until_ready(multi_bce(logits, slogits, y1, y2, sweight=0.2))
    ref = jax.block_until_ready(_reference(logits, slogits, y1, y2, sweight=0.2))

    assert out.shape == (), out.shape
    assert jnp.allclose(out, ref, rtol=1e-5, atol=1e-5), (out, ref)
    print("KERNEL_OK")
</pallas_src>

<mosaic_0001>
module attributes {stable_mosaic.version = 11 : i64} {
  func.func @_multi_bce_kernel(%arg0: memref<16x128xf32, #tpu.memory_space<vmem>>, %arg1: memref<16x128xf32, #tpu.memory_space<vmem>>, %arg2: memref<1x1xf32, #tpu.memory_space<smem>>) attributes {dimension_semantics = [], scalar_prefetch = 0 : i64, scratch_operands = 0 : i64, tpu.core_type = #tpu.core_type<tc>} {
    %c0 = arith.constant 0 : index
    %c0_0 = arith.constant 0 : index
    %0 = vector.load %arg0[%c0, %c0_0] : memref<16x128xf32, #tpu.memory_space<vmem>>, vector<16x128xf32>
    %c0_1 = arith.constant 0 : index
    %c0_2 = arith.constant 0 : index
    %1 = vector.load %arg1[%c0_1, %c0_2] : memref<16x128xf32, #tpu.memory_space<vmem>>, vector<16x128xf32>
    %cst = arith.constant 0.000000e+00 : f32
    %2 = vector.broadcast %cst : f32 to vector<16x128xf32>
    %3 = arith.maximumf %0, %2 : vector<16x128xf32>
    %4 = arith.mulf %0, %1 : vector<16x128xf32>
    %5 = arith.subf %3, %4 : vector<16x128xf32>
    %6 = math.absf %0 : vector<16x128xf32>
    %cst_3 = arith.constant 0.000000e+00 : f32
    %7 = vector.broadcast %cst_3 : f32 to vector<16x128xf32>
    %8 = arith.subf %7, %6 : vector<16x128xf32>
    %9 = math.exp %8 : vector<16x128xf32>
    %10 = math.log1p %9 : vector<16x128xf32>
    %11 = arith.addf %5, %10 : vector<16x128xf32>
    %12 = tpu.iota {dimensions = array<i32: 0>} : vector<16x128xi32>
    %c8_i32 = arith.constant 8 : i32
    %13 = vector.broadcast %c8_i32 : i32 to vector<16x128xi32>
    %14 = arith.cmpi slt, %12, %13 : vector<16x128xi32>
    %cst_4 = arith.constant 3.125000e-02 : f32
    %cst_5 = arith.constant 7.812500e-04 : f32
    %15 = vector.broadcast %cst_4 : f32 to vector<16x128xf32>
    %16 = vector.broadcast %cst_5 : f32 to vector<16x128xf32>
    %17 = arith.select %14, %15, %16 : vector<16x128xi1>, vector<16x128xf32>
    %18 = arith.mulf %17, %11 : vector<16x128xf32>
    %19 = vector.shape_cast %18 : vector<16x128xf32> to vector<1x16x128xf32>
    %cst_6 = arith.constant dense<0.000000e+00> : vector<1xf32>
    %20 = vector.multi_reduction <add>, %19, %cst_6 [1, 2] : vector<1x16x128xf32> to vector<1xf32>
    %21 = vector.shape_cast %20 : vector<1xf32> to vector<1x1x1xf32>
    %22 = vector.extract %21[0, 0, 0] : f32 from vector<1x1x1xf32>
    %c0_7 = arith.constant 0 : index
    %c0_8 = arith.constant 0 : index
    %23 = memref.load %arg2[%c0_7, %c0_8] : memref<1x1xf32, #tpu.memory_space<smem>>
    memref.store %22, %arg2[%c0_7, %c0_8] : memref<1x1xf32, #tpu.memory_space<smem>>
    return
  }
}

</mosaic_0001>

<llo_original>
// kernel: tpu_custom_call.1
$region0: #{tpu_custom_call.1}
  #allocation0 [shape = 'u32[]', space=smem, size = 0x4, offset = 0x4, fixed_abs, tag = 'smem constant byte address 0x4 - core index']
  #allocation1 [shape = 'u32[144,128]{1,0:T(1,128)}', space=vmem, size = 0x12000, scoped, tag = 'internal scratch']
  %s0 = inlined_call_operand.hbm [shape: f32[16,128], index: 0, kind: input, shape index: {}]
  %s1 = inlined_call_operand.hbm [shape: f32[16,128], index: 1, kind: input, shape index: {}]
  %s2 = inlined_call_operand.hbm [shape: f32[1,1], index: 2, kind: output, shape index: {}]
  %s3 = sld [smem:[#allocation0]]
  $region26: #{tpu_custom_call.1} parent=0
    _
  %s5 = ssub.s32 1, %s3
  %s6 = scalar_select 0, %s5, %s3
  $region1: #{tpu_custom_call.1} parent=0
    #allocation2 [shape = 'u8[8192]{0}', space=vmem, size = 0x2000, scoped, tag = 'input window, operand 0, single buffered']
    #allocation3 [shape = 's32[1]{0}', space=sflag, size = 0x4, scoped, tag = 'scoped memory for tpu_custom_call.1']
    #allocation4 [shape = 's32[1]{0}', space=sflag, size = 0x4, scoped, tag = 'scoped memory for tpu_custom_call.1']
    #allocation5 [shape = 'u8[8192]{0}', space=vmem, size = 0x2000, scoped, tag = 'input window, operand 1, single buffered']
    #allocation6 [shape = 's32[1]{0}', space=sflag, size = 0x4, scoped, tag = 'scoped memory for tpu_custom_call.1']
    #allocation7 [shape = 'u8[512]{0}', space=smem, size = 0x200, scoped, tag = 'output window, operand 0, single buffered']
    %7 = vsyncpa [#allocation3], 0
    %8 = vsyncpa [#allocation6], 0
    %9 = vsyncpa [#allocation4], 0
    // Predicated region
    $region2: #{tpu_custom_call.1} parent=1 // pred_check
      _
    $region3: #{tpu_custom_call.1} parent=1 // pred_check_branch
      %11 = sbr.rel (0) target = $region5
    $region4: #{tpu_custom_call.1} parent=1 // pred_region
      %s13 = ssub.s32 256, 256
      %14 = vsyncadd [#allocation3], %s13
      %s15 = sshll.u32 [#allocation2], 4
      %s16 = int_to_ptr.vmem [resolvable:$true] %s15
      %21 = dma.hbm_to_vmem [thread:$0]  %s0, 256, %s16, [#allocation3], 128, 128, 8
    $region5: #{tpu_custom_call.1} parent=1 // pred_fallthru
      _
    // Predicated region
    $region6: #{tpu_custom_call.1} parent=1 // pred_check
      _
    $region7: #{tpu_custom_call.1} parent=1 // pred_check_branch
      %23 = sbr.rel (0) target = $region9
    $region8: #{tpu_custom_call.1} parent=1 // pred_region
      %s25 = ssub.s32 256, 256
      %26 = vsyncadd [#allocation6], %s25
      %s27 = sshll.u32 [#allocation5], 4
      %s28 = int_to_ptr.vmem [resolvable:$true] %s27
      %33 = dma.hbm_to_vmem [thread:$0]  %s1, 256, %s28, [#allocation6], 128, 128, 8
    $region9: #{tpu_custom_call.1} parent=1 // pred_fallthru
      _
    // Predicated region
    $region10: #{tpu_custom_call.1} parent=1 // pred_check
      _
    $region11: #{tpu_custom_call.1} parent=1 // pred_check_branch
      %35 = sbr.rel (0) target = $region13
    $region12: #{tpu_custom_call.1} parent=1 // pred_region
      %36 = dma.done [#allocation3], 256
    $region13: #{tpu_custom_call.1} parent=1 // pred_fallthru
      _
    // Predicated region
    $region14: #{tpu_custom_call.1} parent=1 // pred_check
      _
    $region15: #{tpu_custom_call.1} parent=1 // pred_check_branch
      %38 = sbr.rel (0) target = $region17
    $region16: #{tpu_custom_call.1} parent=1 // pred_region
      %39 = dma.done [#allocation6], 256
    $region17: #{tpu_custom_call.1} parent=1 // pred_fallthru
      _
    %v40 = vld [vmem:[#allocation2] sm:$0xff]
    %v41 = vld [vmem:[#allocation2 + $0x8] sm:$0xff]
    %v42 = vld [vmem:[#allocation5] sm:$0xff]
    %v43 = vld [vmem:[#allocation5 + $0x8] sm:$0xff]
    %v44 = vmax.f32 %v40, 0.0
    %v45 = vmax.f32 %v41, 0.0
    %v46 = vmul.f32 %v40, %v42
    %v47 = vmul.f32 %v41, %v43
    %v48 = vsub.f32 %v44, %v46
    %v49 = vsub.f32 %v45, %v47
    %v50 = vand.u32 2147483647, %v40
    %v51 = vand.u32 2147483647, %v41
    %v52 = vsub.f32 0.0, %v50
    %v53 = vsub.f32 0.0, %v51
    %v54 = vmul.f32 %v52, 1.442695
    %v55 = vpow.pop %v54
    %v56 = vmul.f32 %v53, 1.442695
    %v57 = vpow.pop %v56
    %v58 = vadd.f32 %v55, 1.0
    %v59 = vlog2.pop %v58
    %v60 = vmul.f32 %v59, 0.6931472
    %v61 = vmul.f32 -0.5, %v55
    %v62 = vadd.f32 %v61, 1.0
    %v63 = vmul.f32 %v62, %v55
    %v64 = vand.u32 2147483647, %v55
    %vm65 = vcmp.lt.f32.partialorder %v64, 0.0004427343
    %v66 = vsel %vm65, %v63, %v60
    %v67 = vadd.f32 %v57, 1.0
    %v68 = vlog2.pop %v67
    %v69 = vmul.f32 %v68, 0.6931472
    %v70 = vmul.f32 -0.5, %v57
    %v71 = vadd.f32 %v70, 1.0
    %v72 = vmul.f32 %v71, %v57
    %v73 = vand.u32 2147483647, %v57
    %vm74 = vcmp.lt.f32.partialorder %v73, 0.0004427343
    %v75 = vsel %vm74, %v72, %v69
    %v76 = vadd.f32 %v48, %v66
    %v77 = vadd.f32 %v49, %v75
    %v78 = vlaneseq
    %v79 = vshrl.u32 %v78, 7
    %v80 = vadd.s32 %v79, 8
    %vm81 = vcmp.lt.s32.totalorder %v79, 8
    %vm82 = vcmp.lt.s32.totalorder %v80, 8
    %v83 = vsel %vm81, 0.03125, 0.00078125
    %v84 = vsel %vm82, 0.03125, 0.00078125
    %v85 = vmul.f32 %v83, %v76
    %v86 = vmul.f32 %v84, %v77
    %v87 = vadd.f32 %v85, %v86
    %88 = vadd.xlane.f32.xlu0 %v87
    %v89 = vpop.xlane.xlu0 %88
    %v90 = vrot.slane %v89, 4
    %v91 = vadd.f32 %v89, %v90
    %v92 = vrot.slane %v91, 2
    %v93 = vadd.f32 %v91, %v92
    %v94 = vrot.slane %v93, 1
    %v95 = vadd.f32 %v93, %v94
    %s96 = vtos %v95
    %s97 = scalar_lea.smem [#allocation7], 0
    %98 = sst [smem:[%s97]] %s96
    // Predicated region
    $region18: #{tpu_custom_call.1} parent=1 // pred_check
      _
    $region19: #{tpu_custom_call.1} parent=1 // pred_check_branch
      %100 = sbr.rel (0) target = $region21
    $region20: #{tpu_custom_call.1} parent=1 // pred_region
      %s102 = ssub.s32 16, 16
      %103 = vsyncadd [#allocation4], %s102
      %106 = dma.smem_to_hbm [#allocation7], 16, %s2, [#allocation4]
    $region21: #{tpu_custom_call.1} parent=1 // pred_fallthru
      _
    // Predicated region
    $region22: #{tpu_custom_call.1} parent=1 // pred_check
      _
    $region23: #{tpu_custom_call.1} parent=1 // pred_check_branch
      %108 = sbr.rel (0) target = $region25
    $region24: #{tpu_custom_call.1} parent=1 // pred_region
      %109 = dma.done [#allocation4], 16
    $region25: #{tpu_custom_call.1} parent=1 // pred_fallthru
      _
    %110 = sfence
    %111 = vsyncpa [#allocation3], 1
    %112 = vsyncpa [#allocation6], 1
    %113 = vsyncpa [#allocation4], 1

</llo_original>
